<compile_context>
chip_gen: v7x
topology: tpu7x:2x2x1
jax: 0.10.0
libtpu: 0.0.40
codegen_flags: <defaults>
</compile_context>

<pallas_src>
import functools
import math

import jax
import jax.numpy as jnp
import numpy as np
from jax.experimental import pallas as pl
from jax.experimental.pallas import tpu as pltpu


# ---------------- static packed-output layout (one lane-dense [B,128] f32 slab) ----
OUT_LANES = 128
P1_OFF = 0            # head-1 probs at lanes [0, a1_n)            (a1_n <= 64)
P2_OFF = 64           # head-2 probs at lanes [64, 64 + a2_n)      (a2_n <= 32)
LOGITS2_OFF = 64      # head-2 logits sit at the SAME lanes in the fused output layer,
                      # so probs land at their final packed offset with no relayout
ACT_OFF = 96          # lane 96: action1, lane 97: action2 (stored as f32)
LOGP_OFF = 98         # summed selected log-prob
ENT_OFF = 99          # total entropy


def _align128(n):
    return ((n + 127) // 128) * 128


def _head_stats_dense(z, lane, off, n_act):
    """Lane-dense softmax stats + deterministic (argmax) action for one head.

    z    : [B, 128] f32 fused logits slab
    lane : [B, 128] i32 lane indices
    off  : static lane offset of this head's logits
    n_act: static number of actions
    Returns (probs_dense [B,128] — zeros outside this head's lanes,
             action [B,1] i32, logp_sel [B,1] f32, entropy [B,1] f32).
    """
    mask = (lane >= off) & (lane < off + n_act)
    ml = jnp.where(mask, z, -jnp.inf)                       # masked logits
    m = jnp.max(ml, axis=-1, keepdims=True)                 # [B,1]
    e = jnp.exp(ml - m)                                     # exp(-inf)=0 off-head
    s = jnp.sum(e, axis=-1, keepdims=True)                  # [B,1]
    probs = e / s                                           # lane-dense, zeros off-head
    logs = jnp.log(s)
    logp_sel = -logs                                        # log_softmax at the argmax
    logp = (ml - m) - logs                                  # -inf off-head
    plogp = jnp.where(probs > 0.0, probs * logp, 0.0)       # 0*log(0) NaN guard
    entropy = -jnp.sum(plogp, axis=-1, keepdims=True)       # [B,1]
    # first-occurrence argmax via masked lane index
    is_max = mask & (ml == m)
    action = jnp.min(jnp.where(is_max, lane - off, OUT_LANES),
                     axis=-1, keepdims=True)                # [B,1] i32
    return probs, action, logp_sel, entropy


def _actor_kernel(x_ref, b_ref, w1, w2, w3, w46, w57, wout, out_ref,
                  *, bias_offs, a1_n, a2_n):
    """Full fused forward: 6 serial bf16 matmuls (f32 accumulation), 1 store."""

    def layer(h, w_ref, boff, relu):
        n = w_ref.shape[1]
        y = jnp.dot(h, w_ref[...], preferred_element_type=jnp.float32)
        y = y + b_ref[:, boff:boff + n]
        if relu:
            y = jnp.maximum(y, 0.0).astype(jnp.bfloat16)   # bf16 into next MXU pass
        return y

    o1, o2, o3, o46, o57, oo = bias_offs

    # cast x inside the kernel (hidden under the first matmul)
    h = x_ref[...].astype(jnp.bfloat16)

    # shared base (Dropout == identity in eval mode)
    h = layer(h, w1, o1, True)       # [B, 256]
    h = layer(h, w2, o2, True)       # [B, 256]
    h = layer(h, w3, o3, True)       # [B, 128]

    # both heads, fused:
    y = layer(h, w46, o46, True)     # [B, 192] = [head1 L1 | head2 L1]
    y = layer(y, w57, o57, True)     # [B, 160] = [head1 L2 | head2 L2]
    z = layer(y, wout, oo, False)    # [B, 128]: logits1 @ [0,A1), logits2 @ [64,64+A2)

    lane = jax.lax.broadcasted_iota(jnp.int32, z.shape, 1)
    p1, act1, lp1, ent1 = _head_stats_dense(z, lane, P1_OFF, a1_n)
    p2, act2, lp2, ent2 = _head_stats_dense(z, lane, LOGITS2_OFF, a2_n)

    # compose the packed slab entirely in registers; ONE full-width store
    slab = p1 + p2                                          # disjoint lane supports
    slab = jnp.where(lane == ACT_OFF, act1.astype(jnp.float32), slab)
    slab = jnp.where(lane == ACT_OFF + 1, act2.astype(jnp.float32), slab)
    slab = jnp.where(lane == LOGP_OFF, lp1 + lp2, slab)     # cat(...,-1).sum(-1, keepdim)
    slab = jnp.where(lane == ENT_OFF, ent1 + ent2, slab)    # total entropy
    out_ref[...] = slab


def _pick_tb(batch, batch_block):
    """Batch block size: big blocks for large B, 2 blocks for medium B (v7x dual-TC)."""
    if batch > batch_block:
        return batch_block
    if batch >= 16:
        # split into 2 blocks so dimension_semantics=("parallel",) can shard the
        # batch across both TensorCores on v7x (cheap extra step on v5e/v6e)
        half = -(-batch // 2)
        return min(batch, ((half + 7) // 8) * 8)
    return batch


def actor_forward(x, params, n_actions, *, batch_block=1024):
    w1, w2, w3, w46, w57, wout, bias_pack, bias_offs = params
    B, F = x.shape
    a1_n, a2_n = n_actions
    assert a1_n <= P2_OFF, "head-1 action count must fit below the head-2 lane block"
    assert a2_n <= ACT_OFF - P2_OFF, "head-2 action count must fit below the scalar lanes"

    TB = _pick_tb(B, batch_block)
    grid = (pl.cdiv(B, TB),)

    kernel = functools.partial(_actor_kernel, bias_offs=bias_offs,
                               a1_n=a1_n, a2_n=a2_n)

    def full_spec(arr):  # weights/bias: whole array, constant block index
        return pl.BlockSpec(arr.shape, lambda i: (0, 0))

    grid_spec = pltpu.PrefetchScalarGridSpec(
        num_scalar_prefetch=0,
        grid=grid,
        in_specs=[
            pl.BlockSpec((TB, F), lambda i: (i, 0)),          # x, batch-blocked, native dtype
            full_spec(bias_pack),
            full_spec(w1), full_spec(w2), full_spec(w3),
            full_spec(w46), full_spec(w57), full_spec(wout),
        ],
        out_specs=pl.BlockSpec((TB, OUT_LANES), lambda i: (i, 0)),
    )

    packed = pl.pallas_call(
        kernel,
        out_shape=jax.ShapeDtypeStruct((B, OUT_LANES), jnp.float32),
        grid_spec=grid_spec,
        compiler_params=pltpu.CompilerParams(
            dimension_semantics=("parallel",)),   # shards batch across TCs on v7x
    )(x, bias_pack, w1, w2, w3, w46, w57, wout)

    # unpack the lane-dense slab (pure layout plumbing, outside the kernel)
    probs1 = packed[:, P1_OFF:P1_OFF + a1_n]
    probs2 = packed[:, P2_OFF:P2_OFF + a2_n]
    actions = packed[:, ACT_OFF:ACT_OFF + 2].astype(jnp.int32)
    log_probs = packed[:, LOGP_OFF:LOGP_OFF + 1]
    total_entropy = packed[:, ENT_OFF:ENT_OFF + 1]
    return actions, log_probs, (probs1, probs2), total_entropy


# ---------------- parameter construction (host-side, exact fusion) ----------------
def _init_linear(key, fan_in, fan_out, gain=None):
    """Deterministic PyTorch-style Linear init, weight pre-transposed to [in, out]."""
    kw, kb = jax.random.split(key)
    bound = 1.0 / math.sqrt(fan_in)
    w = jax.random.uniform(kw, (fan_in, fan_out), jnp.float32, -bound, bound)
    b = jax.random.uniform(kb, (1, fan_out), jnp.float32, -bound, bound)
    if gain is not None:  # Categorical output layer: small-gain weights, zero bias
        w = w * gain
        b = jnp.zeros_like(b)
    return w, b


def make_params(key, feature_num, n_actions):
    a1_n, a2_n = n_actions
    keys = jax.random.split(key, 10)
    w1, b1 = _init_linear(keys[0], feature_num, 256)
    w2, b2 = _init_linear(keys[1], 256, 256)
    w3, b3 = _init_linear(keys[2], 256, 128)
    w4, b4 = _init_linear(keys[3], 128, 128)
    w5, b5 = _init_linear(keys[4], 128, 128)
    wo1, bo1 = _init_linear(keys[5], 128, a1_n, gain=0.01)
    w6, b6 = _init_linear(keys[6], 128, 64)
    w7, b7 = _init_linear(keys[7], 64, 32)
    wo2, bo2 = _init_linear(keys[8], 32, a2_n, gain=0.01)

    # --- exact head fusion, done once at init time ---
    # entry: [128, 192] = [w4 | w6]
    w46 = jnp.concatenate([w4, w6], axis=1)
    b46 = jnp.concatenate([b4, b6], axis=1)
    # middle: block-diag(w5 [128,128], w7 [64,32]) -> [192, 160]
    w57 = jnp.zeros((192, 160), jnp.float32)
    w57 = w57.at[:128, :128].set(w5).at[128:, 128:].set(w7)
    b57 = jnp.concatenate([b5, b7], axis=1)
    # output: [160, 128]; wo1 -> cols [0, A1), wo2 -> cols [64, 64+A2)
    wout = jnp.zeros((160, OUT_LANES), jnp.float32)
    wout = wout.at[:128, :a1_n].set(wo1).at[128:, LOGITS2_OFF:LOGITS2_OFF + a2_n].set(wo2)
    bout = jnp.zeros((1, OUT_LANES), jnp.float32)
    bout = bout.at[:, :a1_n].set(bo1).at[:, LOGITS2_OFF:LOGITS2_OFF + a2_n].set(bo2)

    # --- pack all biases into one lane-dense f32 slab at 128-aligned offsets ---
    biases = [b1, b2, b3, b46, b57, bout]
    offs, cur = [], 0
    for bb in biases:
        offs.append(cur)
        cur = _align128(cur + bb.shape[1])
    bias_pack = jnp.zeros((1, cur), jnp.float32)
    for off, bb in zip(offs, biases):
        bias_pack = bias_pack.at[:, off:off + bb.shape[1]].set(bb)

    # weights streamed as bf16 (MXU-native); f32 accumulation inside the kernel
    weights = tuple(w.astype(jnp.bfloat16) for w in (w1, w2, w3, w46, w57, wout))
    return weights + (bias_pack, tuple(offs))


# ---------------- pure-JAX reference (same bf16 weights, f32 math) ----------------
def _reference(x, params, n_actions):
    w1, w2, w3, w46, w57, wout, bias_pack, offs = params
    a1_n, a2_n = n_actions

    def layer(h, w_bf16, off, relu):
        w = w_bf16.astype(jnp.float32)
        n = w_bf16.shape[1]
        y = jnp.dot(h.astype(jnp.float32), w,
                    precision=jax.lax.Precision.HIGHEST) + bias_pack[:, off:off + n]
        if relu:
            y = jnp.maximum(y, 0.0).astype(jnp.bfloat16)
        return y

    h = x.astype(jnp.bfloat16)
    h = layer(h, w1, offs[0], True)
    h = layer(h, w2, offs[1], True)
    h = layer(h, w3, offs[2], True)
    h = layer(h, w46, offs[3], True)
    h = layer(h, w57, offs[4], True)
    z = layer(h, wout, offs[5], False)
    logits1 = z[:, :a1_n]
    logits2 = z[:, LOGITS2_OFF:LOGITS2_OFF + a2_n]

    def stats(logits):
        m = logits.max(-1, keepdims=True)
        e = jnp.exp(logits - m)
        s = e.sum(-1, keepdims=True)
        probs = e / s
        logp = (logits - m) - jnp.log(s)
        lp_sel = jnp.max(logp, axis=-1, keepdims=True)
        arg = jnp.argmax(logits, axis=-1, keepdims=True).astype(jnp.int32)
        ent = -(jnp.where(probs > 0, probs * logp, 0.0)).sum(-1, keepdims=True)
        return probs, arg, lp_sel, ent

    p1, a1, l1, e1 = stats(logits1)
    p2, a2, l2, e2 = stats(logits2)
    return (p1, p2), jnp.concatenate([a1, a2], -1), l1 + l2, e1 + e2


if __name__ == "__main__":
    key = jax.random.PRNGKey(0)
    k_x, k_p = jax.random.split(key)

    batch = 4
    feature_num = 16
    n_actions = (6, 4)

    x = jax.random.normal(k_x, (batch, feature_num), jnp.float32)
    params = make_params(k_p, feature_num, n_actions)

    actions, log_probs, (probs1, probs2), total_entropy = actor_forward(x, params, n_actions)
    jax.block_until_ready((actions, log_probs, probs1, probs2, total_entropy))

    # shape / dtype / range checks
    assert actions.shape == (batch, 2) and actions.dtype == jnp.int32
    assert log_probs.shape == (batch, 1)
    assert probs1.shape == (batch, n_actions[0])
    assert probs2.shape == (batch, n_actions[1])
    assert total_entropy.shape == (batch, 1)
    assert bool(jnp.all((actions[:, 0] >= 0) & (actions[:, 0] < n_actions[0])))
    assert bool(jnp.all((actions[:, 1] >= 0) & (actions[:, 1] < n_actions[1])))

    # numerical check against a pure-JAX reference using the same bf16 weights
    (rp1, rp2), racts, rlp, rent = _reference(x, params, n_actions)
    np.testing.assert_allclose(np.asarray(probs1), np.asarray(rp1), atol=1e-4, rtol=0)
    np.testing.assert_allclose(np.asarray(probs2), np.asarray(rp2), atol=1e-4, rtol=0)
    np.testing.assert_allclose(np.asarray(log_probs), np.asarray(rlp), atol=1e-4, rtol=0)
    np.testing.assert_allclose(np.asarray(total_entropy), np.asarray(rent), atol=1e-4, rtol=0)
    np.testing.assert_array_equal(np.asarray(actions), np.asarray(racts))
    np.testing.assert_allclose(np.asarray(probs1).sum(-1), 1.0, atol=1e-4, rtol=0)
    np.testing.assert_allclose(np.asarray(probs2).sum(-1), 1.0, atol=1e-4, rtol=0)

    print("KERNEL_OK")
</pallas_src>

<mosaic_0001>
module attributes {stable_mosaic.version = 11 : i64} {
  func.func @_actor_kernel(%arg0: i32, %arg1: memref<4x16xf32, #tpu.memory_space<vmem>>, %arg2: memref<1x1280xf32, #tpu.memory_space<vmem>>, %arg3: memref<16x256xbf16, #tpu.memory_space<vmem>>, %arg4: memref<256x256xbf16, #tpu.memory_space<vmem>>, %arg5: memref<256x128xbf16, #tpu.memory_space<vmem>>, %arg6: memref<128x192xbf16, #tpu.memory_space<vmem>>, %arg7: memref<192x160xbf16, #tpu.memory_space<vmem>>, %arg8: memref<160x128xbf16, #tpu.memory_space<vmem>>, %arg9: memref<4x128xf32, #tpu.memory_space<vmem>>) attributes {dimension_semantics = [#tpu.dimension_semantics<parallel>], iteration_bounds = array<i64: 1>, scalar_prefetch = 0 : i64, scratch_operands = 0 : i64, tpu.core_type = #tpu.core_type<tc>, window_params = [{transform_indices = @transform_0, window_bounds = array<i64: 4, 16>}, {pipeline_mode = #tpu.pipeline_mode<synchronous>, transform_indices = @transform_1, window_bounds = array<i64: 1, 1280>}, {pipeline_mode = #tpu.pipeline_mode<synchronous>, transform_indices = @transform_2, window_bounds = array<i64: 16, 256>}, {pipeline_mode = #tpu.pipeline_mode<synchronous>, transform_indices = @transform_3, window_bounds = array<i64: 256, 256>}, {pipeline_mode = #tpu.pipeline_mode<synchronous>, transform_indices = @transform_4, window_bounds = array<i64: 256, 128>}, {pipeline_mode = #tpu.pipeline_mode<synchronous>, transform_indices = @transform_5, window_bounds = array<i64: 128, 192>}, {pipeline_mode = #tpu.pipeline_mode<synchronous>, transform_indices = @transform_6, window_bounds = array<i64: 192, 160>}, {pipeline_mode = #tpu.pipeline_mode<synchronous>, transform_indices = @transform_7, window_bounds = array<i64: 160, 128>}, {transform_indices = @transform_8, window_bounds = array<i64: 4, 128>}]} {
    %c0 = arith.constant 0 : index
    %c0_0 = arith.constant 0 : index
    %0 = vector.load %arg1[%c0, %c0_0] : memref<4x16xf32, #tpu.memory_space<vmem>>, vector<4x16xf32>
    %1 = arith.truncf %0 : vector<4x16xf32> to vector<4x16xbf16>
    %c0_1 = arith.constant 0 : index
    %c0_2 = arith.constant 0 : index
    %2 = vector.load %arg3[%c0_1, %c0_2] : memref<16x256xbf16, #tpu.memory_space<vmem>>, vector<16x256xbf16>
    %cst = arith.constant dense<0.000000e+00> : vector<4x256xf32>
    %3 = tpu.matmul %1, %2, %cst {dimension_numbers = #tpu.dot_dimension_numbers<[1], [0], [0], [1], [0, 0, 1, 1], [], []>} : vector<4x16xbf16>, vector<16x256xbf16>, vector<4x256xf32> -> vector<4x256xf32>
    %c0_3 = arith.constant 0 : index
    %c0_4 = arith.constant 0 : index
    %4 = vector.load %arg2[%c0_3, %c0_4] : memref<1x1280xf32, #tpu.memory_space<vmem>>, vector<1x256xf32>
    %5 = vector.broadcast %4 : vector<1x256xf32> to vector<4x256xf32>
    %6 = arith.addf %3, %5 : vector<4x256xf32>
    %cst_5 = arith.constant 0.000000e+00 : f32
    %7 = vector.broadcast %cst_5 : f32 to vector<4x256xf32>
    %8 = arith.maximumf %6, %7 : vector<4x256xf32>
    %9 = arith.truncf %8 : vector<4x256xf32> to vector<4x256xbf16>
    %c0_6 = arith.constant 0 : index
    %c0_7 = arith.constant 0 : index
    %10 = vector.load %arg4[%c0_6, %c0_7] : memref<256x256xbf16, #tpu.memory_space<vmem>>, vector<256x256xbf16>
    %cst_8 = arith.constant dense<0.000000e+00> : vector<4x256xf32>
    %11 = tpu.matmul %9, %10, %cst_8 {dimension_numbers = #tpu.dot_dimension_numbers<[1], [0], [0], [1], [0, 0, 1, 1], [], []>} : vector<4x256xbf16>, vector<256x256xbf16>, vector<4x256xf32> -> vector<4x256xf32>
    %c0_9 = arith.constant 0 : index
    %c256 = arith.constant 256 : index
    %12 = vector.load %arg2[%c0_9, %c256] : memref<1x1280xf32, #tpu.memory_space<vmem>>, vector<1x256xf32>
    %13 = vector.broadcast %12 : vector<1x256xf32> to vector<4x256xf32>
    %14 = arith.addf %11, %13 : vector<4x256xf32>
    %cst_10 = arith.constant 0.000000e+00 : f32
    %15 = vector.broadcast %cst_10 : f32 to vector<4x256xf32>
    %16 = arith.maximumf %14, %15 : vector<4x256xf32>
    %17 = arith.truncf %16 : vector<4x256xf32> to vector<4x256xbf16>
    %c0_11 = arith.constant 0 : index
    %c0_12 = arith.constant 0 : index
    %18 = vector.load %arg5[%c0_11, %c0_12] : memref<256x128xbf16, #tpu.memory_space<vmem>>, vector<256x128xbf16>
    %cst_13 = arith.constant dense<0.000000e+00> : vector<4x128xf32>
    %19 = tpu.matmul %17, %18, %cst_13 {dimension_numbers = #tpu.dot_dimension_numbers<[1], [0], [0], [1], [0, 0, 1, 1], [], []>} : vector<4x256xbf16>, vector<256x128xbf16>, vector<4x128xf32> -> vector<4x128xf32>
    %c0_14 = arith.constant 0 : index
    %c512 = arith.constant 512 : index
    %20 = vector.load %arg2[%c0_14, %c512] : memref<1x1280xf32, #tpu.memory_space<vmem>>, vector<1x128xf32>
    %21 = vector.broadcast %20 : vector<1x128xf32> to vector<4x128xf32>
    %22 = arith.addf %19, %21 : vector<4x128xf32>
    %cst_15 = arith.constant 0.000000e+00 : f32
    %23 = vector.broadcast %cst_15 : f32 to vector<4x128xf32>
    %24 = arith.maximumf %22, %23 : vector<4x128xf32>
    %25 = arith.truncf %24 : vector<4x128xf32> to vector<4x128xbf16>
    %c0_16 = arith.constant 0 : index
    %c0_17 = arith.constant 0 : index
    %26 = vector.load %arg6[%c0_16, %c0_17] : memref<128x192xbf16, #tpu.memory_space<vmem>>, vector<128x192xbf16>
    %cst_18 = arith.constant dense<0.000000e+00> : vector<4x192xf32>
    %27 = tpu.matmul %25, %26, %cst_18 {dimension_numbers = #tpu.dot_dimension_numbers<[1], [0], [0], [1], [0, 0, 1, 1], [], []>} : vector<4x128xbf16>, vector<128x192xbf16>, vector<4x192xf32> -> vector<4x192xf32>
    %c0_19 = arith.constant 0 : index
    %c640 = arith.constant 640 : index
    %28 = vector.load %arg2[%c0_19, %c640] : memref<1x1280xf32, #tpu.memory_space<vmem>>, vector<1x192xf32>
    %29 = vector.broadcast %28 : vector<1x192xf32> to vector<4x192xf32>
    %30 = arith.addf %27, %29 : vector<4x192xf32>
    %cst_20 = arith.constant 0.000000e+00 : f32
    %31 = vector.broadcast %cst_20 : f32 to vector<4x192xf32>
    %32 = arith.maximumf %30, %31 : vector<4x192xf32>
    %33 = arith.truncf %32 : vector<4x192xf32> to vector<4x192xbf16>
    %c0_21 = arith.constant 0 : index
    %c0_22 = arith.constant 0 : index
    %34 = vector.load %arg7[%c0_21, %c0_22] : memref<192x160xbf16, #tpu.memory_space<vmem>>, vector<192x160xbf16>
    %cst_23 = arith.constant dense<0.000000e+00> : vector<4x160xf32>
    %35 = tpu.matmul %33, %34, %cst_23 {dimension_numbers = #tpu.dot_dimension_numbers<[1], [0], [0], [1], [0, 0, 1, 1], [], []>} : vector<4x192xbf16>, vector<192x160xbf16>, vector<4x160xf32> -> vector<4x160xf32>
    %c0_24 = arith.constant 0 : index
    %c896 = arith.constant 896 : index
    %36 = vector.load %arg2[%c0_24, %c896] : memref<1x1280xf32, #tpu.memory_space<vmem>>, vector<1x160xf32>
    %37 = vector.broadcast %36 : vector<1x160xf32> to vector<4x160xf32>
    %38 = arith.addf %35, %37 : vector<4x160xf32>
    %cst_25 = arith.constant 0.000000e+00 : f32
    %39 = vector.broadcast %cst_25 : f32 to vector<4x160xf32>
    %40 = arith.maximumf %38, %39 : vector<4x160xf32>
    %41 = arith.truncf %40 : vector<4x160xf32> to vector<4x160xbf16>
    %c0_26 = arith.constant 0 : index
    %c0_27 = arith.constant 0 : index
    %42 = vector.load %arg8[%c0_26, %c0_27] : memref<160x128xbf16, #tpu.memory_space<vmem>>, vector<160x128xbf16>
    %cst_28 = arith.constant dense<0.000000e+00> : vector<4x128xf32>
    %43 = tpu.matmul %41, %42, %cst_28 {dimension_numbers = #tpu.dot_dimension_numbers<[1], [0], [0], [1], [0, 0, 1, 1], [], []>} : vector<4x160xbf16>, vector<160x128xbf16>, vector<4x128xf32> -> vector<4x128xf32>
    %c0_29 = arith.constant 0 : index
    %c1152 = arith.constant 1152 : index
    %44 = vector.load %arg2[%c0_29, %c1152] : memref<1x1280xf32, #tpu.memory_space<vmem>>, vector<1x128xf32>
    %45 = vector.broadcast %44 : vector<1x128xf32> to vector<4x128xf32>
    %46 = arith.addf %43, %45 : vector<4x128xf32>
    %47 = tpu.iota {dimensions = array<i32: 1>} : vector<4x128xi32>
    %c0_i32 = arith.constant 0 : i32
    %48 = vector.broadcast %c0_i32 : i32 to vector<4x128xi32>
    %49 = arith.cmpi sge, %47, %48 : vector<4x128xi32>
    %c6_i32 = arith.constant 6 : i32
    %50 = vector.broadcast %c6_i32 : i32 to vector<4x128xi32>
    %51 = arith.cmpi slt, %47, %50 : vector<4x128xi32>
    %52 = arith.andi %49, %51 : vector<4x128xi1>
    %cst_30 = arith.constant 0xFF800000 : f32
    %53 = vector.broadcast %cst_30 : f32 to vector<4x128xf32>
    %54 = arith.select %52, %46, %53 : vector<4x128xi1>, vector<4x128xf32>
    %cst_31 = arith.constant dense<0xFF800000> : vector<4xf32>
    %55 = vector.multi_reduction <maximumf>, %54, %cst_31 [1] : vector<4x128xf32> to vector<4xf32>
    %56 = vector.shape_cast %55 : vector<4xf32> to vector<4x1xf32>
    %57 = vector.broadcast %56 : vector<4x1xf32> to vector<4x128xf32>
    %58 = arith.subf %54, %57 : vector<4x128xf32>
    %59 = math.exp %58 : vector<4x128xf32>
    %cst_32 = arith.constant dense<0.000000e+00> : vector<4xf32>
    %60 = vector.multi_reduction <add>, %59, %cst_32 [1] : vector<4x128xf32> to vector<4xf32>
    %61 = vector.shape_cast %60 : vector<4xf32> to vector<4x1xf32>
    %62 = vector.broadcast %61 : vector<4x1xf32> to vector<4x128xf32>
    %63 = arith.divf %59, %62 : vector<4x128xf32>
    %64 = math.log %61 : vector<4x1xf32>
    %cst_33 = arith.constant 0.000000e+00 : f32
    %65 = vector.broadcast %cst_33 : f32 to vector<4x1xf32>
    %66 = arith.subf %65, %64 : vector<4x1xf32>
    %67 = vector.broadcast %56 : vector<4x1xf32> to vector<4x128xf32>
    %68 = arith.subf %54, %67 : vector<4x128xf32>
    %69 = vector.broadcast %64 : vector<4x1xf32> to vector<4x128xf32>
    %70 = arith.subf %68, %69 : vector<4x128xf32>
    %cst_34 = arith.constant 0.000000e+00 : f32
    %71 = vector.broadcast %cst_34 : f32 to vector<4x128xf32>
    %72 = arith.cmpf ogt, %63, %71 : vector<4x128xf32>
    %73 = arith.mulf %63, %70 : vector<4x128xf32>
    %cst_35 = arith.constant 0.000000e+00 : f32
    %74 = vector.broadcast %cst_35 : f32 to vector<4x128xf32>
    %75 = arith.select %72, %73, %74 : vector<4x128xi1>, vector<4x128xf32>
    %cst_36 = arith.constant dense<0.000000e+00> : vector<4xf32>
    %76 = vector.multi_reduction <add>, %75, %cst_36 [1] : vector<4x128xf32> to vector<4xf32>
    %77 = vector.shape_cast %76 : vector<4xf32> to vector<4x1xf32>
    %cst_37 = arith.constant 0.000000e+00 : f32
    %78 = vector.broadcast %cst_37 : f32 to vector<4x1xf32>
    %79 = arith.subf %78, %77 : vector<4x1xf32>
    %80 = vector.broadcast %56 : vector<4x1xf32> to vector<4x128xf32>
    %81 = arith.cmpf oeq, %54, %80 : vector<4x128xf32>
    %82 = arith.andi %52, %81 : vector<4x128xi1>
    %c0_i32_38 = arith.constant 0 : i32
    %83 = vector.broadcast %c0_i32_38 : i32 to vector<4x128xi32>
    %84 = arith.subi %47, %83 : vector<4x128xi32>
    %c128_i32 = arith.constant 128 : i32
    %85 = vector.broadcast %c128_i32 : i32 to vector<4x128xi32>
    %86 = arith.select %82, %84, %85 : vector<4x128xi1>, vector<4x128xi32>
    %cst_39 = arith.constant dense<2147483647> : vector<4xi32>
    %87 = vector.multi_reduction <minsi>, %86, %cst_39 [1] : vector<4x128xi32> to vector<4xi32>
    %88 = vector.shape_cast %87 : vector<4xi32> to vector<4x1xi32>
    %c64_i32 = arith.constant 64 : i32
    %89 = vector.broadcast %c64_i32 : i32 to vector<4x128xi32>
    %90 = arith.cmpi sge, %47, %89 : vector<4x128xi32>
    %c68_i32 = arith.constant 68 : i32
    %91 = vector.broadcast %c68_i32 : i32 to vector<4x128xi32>
    %92 = arith.cmpi slt, %47, %91 : vector<4x128xi32>
    %93 = arith.andi %90, %92 : vector<4x128xi1>
    %cst_40 = arith.constant 0xFF800000 : f32
    %94 = vector.broadcast %cst_40 : f32 to vector<4x128xf32>
    %95 = arith.select %93, %46, %94 : vector<4x128xi1>, vector<4x128xf32>
    %cst_41 = arith.constant dense<0xFF800000> : vector<4xf32>
    %96 = vector.multi_reduction <maximumf>, %95, %cst_41 [1] : vector<4x128xf32> to vector<4xf32>
    %97 = vector.shape_cast %96 : vector<4xf32> to vector<4x1xf32>
    %98 = vector.broadcast %97 : vector<4x1xf32> to vector<4x128xf32>
    %99 = arith.subf %95, %98 : vector<4x128xf32>
    %100 = math.exp %99 : vector<4x128xf32>
    %cst_42 = arith.constant dense<0.000000e+00> : vector<4xf32>
    %101 = vector.multi_reduction <add>, %100, %cst_42 [1] : vector<4x128xf32> to vector<4xf32>
    %102 = vector.shape_cast %101 : vector<4xf32> to vector<4x1xf32>
    %103 = vector.broadcast %102 : vector<4x1xf32> to vector<4x128xf32>
    %104 = arith.divf %100, %103 : vector<4x128xf32>
    %105 = math.log %102 : vector<4x1xf32>
    %cst_43 = arith.constant 0.000000e+00 : f32
    %106 = vector.broadcast %cst_43 : f32 to vector<4x1xf32>
    %107 = arith.subf %106, %105 : vector<4x1xf32>
    %108 = vector.broadcast %97 : vector<4x1xf32> to vector<4x128xf32>
    %109 = arith.subf %95, %108 : vector<4x128xf32>
    %110 = vector.broadcast %105 : vector<4x1xf32> to vector<4x128xf32>
    %111 = arith.subf %109, %110 : vector<4x128xf32>
    %cst_44 = arith.constant 0.000000e+00 : f32
    %112 = vector.broadcast %cst_44 : f32 to vector<4x128xf32>
    %113 = arith.cmpf ogt, %104, %112 : vector<4x128xf32>
    %114 = arith.mulf %104, %111 : vector<4x128xf32>
    %cst_45 = arith.constant 0.000000e+00 : f32
    %115 = vector.broadcast %cst_45 : f32 to vector<4x128xf32>
    %116 = arith.select %113, %114, %115 : vector<4x128xi1>, vector<4x128xf32>
    %cst_46 = arith.constant dense<0.000000e+00> : vector<4xf32>
    %117 = vector.multi_reduction <add>, %116, %cst_46 [1] : vector<4x128xf32> to vector<4xf32>
    %118 = vector.shape_cast %117 : vector<4xf32> to vector<4x1xf32>
    %cst_47 = arith.constant 0.000000e+00 : f32
    %119 = vector.broadcast %cst_47 : f32 to vector<4x1xf32>
    %120 = arith.subf %119, %118 : vector<4x1xf32>
    %121 = vector.broadcast %97 : vector<4x1xf32> to vector<4x128xf32>
    %122 = arith.cmpf oeq, %95, %121 : vector<4x128xf32>
    %123 = arith.andi %93, %122 : vector<4x128xi1>
    %c64_i32_48 = arith.constant 64 : i32
    %124 = vector.broadcast %c64_i32_48 : i32 to vector<4x128xi32>
    %125 = arith.subi %47, %124 : vector<4x128xi32>
    %c128_i32_49 = arith.constant 128 : i32
    %126 = vector.broadcast %c128_i32_49 : i32 to vector<4x128xi32>
    %127 = arith.select %123, %125, %126 : vector<4x128xi1>, vector<4x128xi32>
    %cst_50 = arith.constant dense<2147483647> : vector<4xi32>
    %128 = vector.multi_reduction <minsi>, %127, %cst_50 [1] : vector<4x128xi32> to vector<4xi32>
    %129 = vector.shape_cast %128 : vector<4xi32> to vector<4x1xi32>
    %130 = arith.addf %63, %104 : vector<4x128xf32>
    %c96_i32 = arith.constant 96 : i32
    %131 = vector.broadcast %c96_i32 : i32 to vector<4x128xi32>
    %132 = arith.cmpi eq, %47, %131 : vector<4x128xi32>
    %133 = arith.sitofp %88 : vector<4x1xi32> to vector<4x1xf32>
    %134 = vector.shape_cast %133 : vector<4x1xf32> to vector<4x1xf32>
    %135 = vector.broadcast %134 : vector<4x1xf32> to vector<4x128xf32>
    %136 = arith.select %132, %135, %130 : vector<4x128xi1>, vector<4x128xf32>
    %c97_i32 = arith.constant 97 : i32
    %137 = vector.broadcast %c97_i32 : i32 to vector<4x128xi32>
    %138 = arith.cmpi eq, %47, %137 : vector<4x128xi32>
    %139 = arith.sitofp %129 : vector<4x1xi32> to vector<4x1xf32>
    %140 = vector.shape_cast %139 : vector<4x1xf32> to vector<4x1xf32>
    %141 = vector.broadcast %140 : vector<4x1xf32> to vector<4x128xf32>
    %142 = arith.select %138, %141, %136 : vector<4x128xi1>, vector<4x128xf32>
    %c98_i32 = arith.constant 98 : i32
    %143 = vector.broadcast %c98_i32 : i32 to vector<4x128xi32>
    %144 = arith.cmpi eq, %47, %143 : vector<4x128xi32>
    %145 = arith.addf %66, %107 : vector<4x1xf32>
    %146 = vector.shape_cast %145 : vector<4x1xf32> to vector<4x1xf32>
    %147 = vector.broadcast %146 : vector<4x1xf32> to vector<4x128xf32>
    %148 = arith.select %144, %147, %142 : vector<4x128xi1>, vector<4x128xf32>
    %c99_i32 = arith.constant 99 : i32
    %149 = vector.broadcast %c99_i32 : i32 to vector<4x128xi32>
    %150 = arith.cmpi eq, %47, %149 : vector<4x128xi32>
    %151 = arith.addf %79, %120 : vector<4x1xf32>
    %152 = vector.shape_cast %151 : vector<4x1xf32> to vector<4x1xf32>
    %153 = vector.broadcast %152 : vector<4x1xf32> to vector<4x128xf32>
    %154 = arith.select %150, %153, %148 : vector<4x128xi1>, vector<4x128xf32>
    %c0_51 = arith.constant 0 : index
    %c0_52 = arith.constant 0 : index
    %155 = vector.load %arg9[%c0_51, %c0_52] : memref<4x128xf32, #tpu.memory_space<vmem>>, vector<4x128xf32>
    tpu.vector_store %arg9[%c0_51, %c0_52], %154 {strides = array<i32>} : memref<4x128xf32, #tpu.memory_space<vmem>>, vector<4x128xf32>,
    return
  }
  func.func @transform_0(%arg0: i32) -> (i32, i32) {
    %c0_i32 = arith.constant 0 : i32
    %c0_i32_0 = arith.constant 0 : i32
    return %arg0, %c0_i32 : i32, i32
  }
  func.func @transform_1(%arg0: i32) -> (i32, i32) {
    %c0_i32 = arith.constant 0 : i32
    %c0_i32_0 = arith.constant 0 : i32
    %c0_i32_1 = arith.constant 0 : i32
    return %c0_i32, %c0_i32_0 : i32, i32
  }
  func.func @transform_2(%arg0: i32) -> (i32, i32) {
    %c0_i32 = arith.constant 0 : i32
    %c0_i32_0 = arith.constant 0 : i32
    %c0_i32_1 = arith.constant 0 : i32
    return %c0_i32, %c0_i32_0 : i32, i32
  }
  func.func @transform_3(%arg0: i32) -> (i32, i32) {
    %c0_i32 = arith.constant 0 : i32
    %c0_i32_0 = arith.constant 0 : i32
    %c0_i32_1 = arith.constant 0 : i32
    return %c0_i32, %c0_i32_0 : i32, i32
  }
  func.func @transform_4(%arg0: i32) -> (i32, i32) {
    %c0_i32 = arith.constant 0 : i32
    %c0_i32_0 = arith.constant 0 : i32
    %c0_i32_1 = arith.constant 0 : i32
    return %c0_i32, %c0_i32_0 : i32, i32
  }
  func.func @transform_5(%arg0: i32) -> (i32, i32) {
    %c0_i32 = arith.constant 0 : i32
    %c0_i32_0 = arith.constant 0 : i32
    %c0_i32_1 = arith.constant 0 : i32
    return %c0_i32, %c0_i32_0 : i32, i32
  }
  func.func @transform_6(%arg0: i32) -> (i32, i32) {
    %c0_i32 = arith.constant 0 : i32
    %c0_i32_0 = arith.constant 0 : i32
    %c0_i32_1 = arith.constant 0 : i32
    return %c0_i32, %c0_i32_0 : i32, i32
  }
  func.func @transform_7(%arg0: i32) -> (i32, i32) {
    %c0_i32 = arith.constant 0 : i32
    %c0_i32_0 = arith.constant 0 : i32
    %c0_i32_1 = arith.constant 0 : i32
    return %c0_i32, %c0_i32_0 : i32, i32
  }
  func.func @transform_8(%arg0: i32) -> (i32, i32) {
    %c0_i32 = arith.constant 0 : i32
    %c0_i32_0 = arith.constant 0 : i32
    return %arg0, %c0_i32 : i32, i32
  }
}

</mosaic_0001>

<llo_original>
// kernel: tpu_custom_call.1
$region0: #{tpu_custom_call.1}
  #allocation0 [shape = 'u32[]', space=smem, size = 0x4, offset = 0x4, fixed_abs, tag = 'smem constant byte address 0x4 - core index']
  #allocation1 [shape = 'u32[144,128]{1,0:T(1,128)}', space=vmem, size = 0x12000, scoped, tag = 'internal scratch']
  %s0 = inlined_call_operand.vmem [shape: f32[4,16], index: 0, kind: input, shape index: {}]
  %s1 = inlined_call_operand.vmem [shape: f32[1,1280], index: 1, kind: input, shape index: {}]
  %s2 = inlined_call_operand.vmem [shape: bf16[16,256], index: 2, kind: input, shape index: {}]
  %s3 = inlined_call_operand.vmem [shape: bf16[256,256], index: 3, kind: input, shape index: {}]
  %s4 = inlined_call_operand.vmem [shape: bf16[256,128], index: 4, kind: input, shape index: {}]
  %s5 = inlined_call_operand.vmem [shape: bf16[128,192], index: 5, kind: input, shape index: {}]
  %s6 = inlined_call_operand.vmem [shape: bf16[192,160], index: 6, kind: input, shape index: {}]
  %s7 = inlined_call_operand.hbm [shape: bf16[160,128], index: 7, kind: input, shape index: {}]
  %s8 = inlined_call_operand.hbm [shape: f32[4,128], index: 8, kind: output, shape index: {}]
  %s9 = sld [smem:[#allocation0]]
  $region46: #{tpu_custom_call.1} parent=0
    _
  %s11 = ssub.s32 1, %s9
  %s12 = scalar_select 0, %s11, %s9
  $region1: #{tpu_custom_call.1} parent=0
    #allocation2 [shape = 'u8[40960]{0}', space=vmem, size = 0xa000, scoped, tag = 'input window, operand 7, single buffered']
    #allocation3 [shape = 's32[1]{0}', space=sflag, size = 0x4, scoped, tag = 'scoped memory for tpu_custom_call.1']
    #allocation4 [shape = 's32[1]{0}', space=sflag, size = 0x4, scoped, tag = 'scoped memory for tpu_custom_call.1']
    #allocation5 [shape = 'u8[2048]{0}', space=vmem, size = 0x800, scoped, tag = 'output window, operand 0, single buffered']
    %13 = vsyncpa [#allocation3], 0
    %14 = vsyncpa [#allocation4], 0
    // Predicated region
    $region2: #{tpu_custom_call.1} parent=1 // pred_check
      _
    $region3: #{tpu_custom_call.1} parent=1 // pred_check_branch
      %16 = sbr.rel (0) target = $region5
    $region4: #{tpu_custom_call.1} parent=1 // pred_region
      _
    $region5: #{tpu_custom_call.1} parent=1 // pred_fallthru
      _
    // Predicated region
    $region6: #{tpu_custom_call.1} parent=1 // pred_check
      _
    $region7: #{tpu_custom_call.1} parent=1 // pred_check_branch
      %18 = sbr.rel (0) target = $region9
    $region8: #{tpu_custom_call.1} parent=1 // pred_region
      _
    $region9: #{tpu_custom_call.1} parent=1 // pred_fallthru
      _
    // Predicated region
    $region10: #{tpu_custom_call.1} parent=1 // pred_check
      _
    $region11: #{tpu_custom_call.1} parent=1 // pred_check_branch
      %20 = sbr.rel (0) target = $region13
    $region12: #{tpu_custom_call.1} parent=1 // pred_region
      _
    $region13: #{tpu_custom_call.1} parent=1 // pred_fallthru
      _
    // Predicated region
    $region14: #{tpu_custom_call.1} parent=1 // pred_check
      _
    $region15: #{tpu_custom_call.1} parent=1 // pred_check_branch
      %22 = sbr.rel (0) target = $region17
    $region16: #{tpu_custom_call.1} parent=1 // pred_region
      _
    $region17: #{tpu_custom_call.1} parent=1 // pred_fallthru
      _
    // Predicated region
    $region18: #{tpu_custom_call.1} parent=1 // pred_check
      _
    $region19: #{tpu_custom_call.1} parent=1 // pred_check_branch
      %24 = sbr.rel (0) target = $region21
    $region20: #{tpu_custom_call.1} parent=1 // pred_region
      _
    $region21: #{tpu_custom_call.1} parent=1 // pred_fallthru
      _
    // Predicated region
    $region22: #{tpu_custom_call.1} parent=1 // pred_check
      _
    $region23: #{tpu_custom_call.1} parent=1 // pred_check_branch
      %26 = sbr.rel (0) target = $region25
    $region24: #{tpu_custom_call.1} parent=1 // pred_region
      _
    $region25: #{tpu_custom_call.1} parent=1 // pred_fallthru
      _
    // Predicated region
    $region26: #{tpu_custom_call.1} parent=1 // pred_check
      _
    $region27: #{tpu_custom_call.1} parent=1 // pred_check_branch
      %28 = sbr.rel (0) target = $region29
    $region28: #{tpu_custom_call.1} parent=1 // pred_region
      _
    $region29: #{tpu_custom_call.1} parent=1 // pred_fallthru
      _
    // Predicated region
    $region30: #{tpu_custom_call.1} parent=1 // pred_check
      _
    $region31: #{tpu_custom_call.1} parent=1 // pred_check_branch
      %30 = sbr.rel (0) target = $region33
    $region32: #{tpu_custom_call.1} parent=1 // pred_region
      %s32 = ssub.s32 1280, 1280
      %33 = vsyncadd [#allocation3], %s32
      %s34 = sshll.u32 [#allocation2], 4
      %s35 = int_to_ptr.vmem [resolvable:$true] %s34
      %40 = dma.hbm_to_vmem [thread:$0]  %s7, 1280, %s35, [#allocation3], 64, 64, 4
    $region33: #{tpu_custom_call.1} parent=1 // pred_fallthru
      _
    // Predicated region
    $region34: #{tpu_custom_call.1} parent=1 // pred_check
      _
    $region35: #{tpu_custom_call.1} parent=1 // pred_check_branch
      %42 = sbr.rel (0) target = $region37
    $region36: #{tpu_custom_call.1} parent=1 // pred_region
      %43 = dma.done [#allocation3], 1280
    $region37: #{tpu_custom_call.1} parent=1 // pred_fallthru
      _
    %v45 = vld [vmem:[%s0] sm:$0xf]
    %v46 = vpack.c.bf16 %v45, %v45
    %v47 = vld [vmem:[%s2] sm:$0xff]
    %v48 = vld [vmem:[%s2 + $0x8] sm:$0xff]
    %v49 = vld [vmem:[%s1] sm:$0x3]
    %v51 = vlaneseq
    %v52 = vshrl.u32 %v51, 7
    %v53 = vsub.s32 0, %v52
    %v54 = vrot.slane %v49, %v53
    %v55 = vlaneseq
    %v56 = vshrl.u32 %v55, 7
    %v57 = vsub.s32 1, %v56
    %v58 = vrot.slane %v49, %v57
    %v63 = vunpack.c.l.b16 %v47
    %v64 = vunpack.c.h.b16 %v47
    %v65 = vunpack.c.l.b16 %v48
    %v66 = vunpack.c.h.b16 %v48
    %v67 = vpack.c.b16 %v65, %v63
    %v68 = vpack.c.b16 %v66, %v64
    %vm71 = vcmask 130048
    %v73 = vsel %vm71, %v46, 0
    %75 = vmatprep.subr.bf16.mxu0 %v68
    %76 = vmatpush1.bf16.msra.mxu0 %v67
    %77 = vmatprep.subr.bf16.mxu0 0
    %78 = vmatpush1.bf16.msra.mxu0 0
    %79 = vmatprep.subr.bf16.mxu0 0
    %80 = vmatpush1.bf16.msra.mxu0 0
    %81 = vmatprep.subr.bf16.mxu0 0
    %82 = vmatpush1.bf16.msra.mxu0 0
    %83 = vmatprep.subr.bf16.mxu0 0
    %84 = vmatpush1.bf16.msra.mxu0 0
    %85 = vmatprep.subr.bf16.mxu0 0
    %86 = vmatpush1.bf16.msra.mxu0 0
    %87 = vmatprep.subr.bf16.mxu0 0
    %88 = vmatpush1.bf16.msra.mxu0 0
    %89 = vmatprep.subr.bf16.mxu0 0
    %90 = vmatpush1.bf16.msra.mxu0 0
    %91 = vmatprep.subr.bf16.mxu0 0
    %92 = vmatpush1.bf16.msra.mxu0 0
    %93 = vmatprep.subr.bf16.mxu0 0
    %94 = vmatpush1.bf16.msra.mxu0 0
    %95 = vmatprep.subr.bf16.mxu0 0
    %96 = vmatpush1.bf16.msra.mxu0 0
    %97 = vmatprep.subr.bf16.mxu0 0
    %98 = vmatpush1.bf16.msra.mxu0 0
    %99 = vmatprep.subr.bf16.mxu0 0
    %100 = vmatpush1.bf16.msra.mxu0 0
    %101 = vmatprep.subr.bf16.mxu0 0
    %102 = vmatpush1.bf16.msra.mxu0 0
    %103 = vmatprep.subr.bf16.mxu0 0
    %104 = vmatpush1.bf16.msra.mxu0 0
    %105 = vmatprep.subr.bf16.mxu0 0
    %106 = vmatpush1.bf16.msra.mxu0 0
    %107 = vmatprep.mubr.bf16.mxu0 0
    %108 = vmatmul.mubr.bf16.gmra.mrb[0].mxu0 %v73
    %v109 = vpop.f32.mrb[0].mxu0
    %v110 = vadd.f32 %v54, %v109
    %v111 = vpop.f32.mrb[0].mxu0
    %v112 = vadd.f32 %v58, %v111
    %v113 = vpop.f32.mrb[0].mxu0
    %v114 = vpop.f32.mrb[0].mxu0
    %115 = vdwg.mxu0
    %v116 = vmax.f32 %v110, 0.0
    %v117 = vmax.f32 %v112, 0.0
    %v118 = vpack.c.bf16 %v116, %v116
    %v119 = vpack.c.bf16 %v117, %v117
    %v120 = vld [vmem:[%s3] sm:$0xff]
    %v121 = vld [vmem:[%s3 + $0x8] sm:$0xff]
    %v122 = vld [vmem:[%s3 + $0x10] sm:$0xff]
    %v123 = vld [vmem:[%s3 + $0x18] sm:$0xff]
    %v124 = vld [vmem:[%s3 + $0x20] sm:$0xff]
    %v125 = vld [vmem:[%s3 + $0x28] sm:$0xff]
    %v126 = vld [vmem:[%s3 + $0x30] sm:$0xff]
    %v127 = vld [vmem:[%s3 + $0x38] sm:$0xff]
    %v128 = vld [vmem:[%s3 + $0x40] sm:$0xff]
    %v129 = vld [vmem:[%s3 + $0x48] sm:$0xff]
    %v130 = vld [vmem:[%s3 + $0x50] sm:$0xff]
    %v131 = vld [vmem:[%s3 + $0x58] sm:$0xff]
    %v132 = vld [vmem:[%s3 + $0x60] sm:$0xff]
    %v133 = vld [vmem:[%s3 + $0x68] sm:$0xff]
    %v134 = vld [vmem:[%s3 + $0x70] sm:$0xff]
    %v135 = vld [vmem:[%s3 + $0x78] sm:$0xff]
    %v136 = vld [vmem:[%s3 + $0x80] sm:$0xff]
    %v137 = vld [vmem:[%s3 + $0x88] sm:$0xff]
    %v138 = vld [vmem:[%s3 + $0x90] sm:$0xff]
    %v139 = vld [vmem:[%s3 + $0x98] sm:$0xff]
    %v140 = vld [vmem:[%s3 + $0xa0] sm:$0xff]
    %v141 = vld [vmem:[%s3 + $0xa8] sm:$0xff]
    %v142 = vld [vmem:[%s3 + $0xb0] sm:$0xff]
    %v143 = vld [vmem:[%s3 + $0xb8] sm:$0xff]
    %v144 = vld [vmem:[%s3 + $0xc0] sm:$0xff]
    %v145 = vld [vmem:[%s3 + $0xc8] sm:$0xff]
    %v146 = vld [vmem:[%s3 + $0xd0] sm:$0xff]
    %v147 = vld [vmem:[%s3 + $0xd8] sm:$0xff]
    %v148 = vld [vmem:[%s3 + $0xe0] sm:$0xff]
    %v149 = vld [vmem:[%s3 + $0xe8] sm:$0xff]
    %v150 = vld [vmem:[%s3 + $0xf0] sm:$0xff]
    %v151 = vld [vmem:[%s3 + $0xf8] sm:$0xff]
    %v152 = vld [vmem:[%s1 + $0x2] sm:$0x3]
    %v154 = vlaneseq
    %v155 = vshrl.u32 %v154, 7
    %v156 = vsub.s32 0, %v155
    %v157 = vrot.slane %v152, %v156
    %v158 = vlaneseq
    %v159 = vshrl.u32 %v158, 7
    %v160 = vsub.s32 1, %v159
    %v161 = vrot.slane %v152, %v160
    %v196 = vunpack.c.l.b16 %v120
    %v197 = vunpack.c.h.b16 %v120
    %v198 = vunpack.c.l.b16 %v121
    %v199 = vunpack.c.h.b16 %v121
    %v200 = vunpack.c.l.b16 %v122
    %v201 = vunpack.c.h.b16 %v122
    %v202 = vunpack.c.l.b16 %v123
    %v203 = vunpack.c.h.b16 %v123
    %v204 = vunpack.c.l.b16 %v124
    %v205 = vunpack.c.h.b16 %v124
    %v206 = vunpack.c.l.b16 %v125
    %v207 = vunpack.c.h.b16 %v125
    %v208 = vunpack.c.l.b16 %v126
    %v209 = vunpack.c.h.b16 %v126
    %v210 = vunpack.c.l.b16 %v127
    %v211 = vunpack.c.h.b16 %v127
    %v212 = vunpack.c.l.b16 %v128
    %v213 = vunpack.c.h.b16 %v128
    %v214 = vunpack.c.l.b16 %v129
    %v215 = vunpack.c.h.b16 %v129
    %v216 = vunpack.c.l.b16 %v130
    %v217 = vunpack.c.h.b16 %v130
    %v218 = vunpack.c.l.b16 %v131
    %v219 = vunpack.c.h.b16 %v131
    %v220 = vunpack.c.l.b16 %v132
    %v221 = vunpack.c.h.b16 %v132
    %v222 = vunpack.c.l.b16 %v133
    %v223 = vunpack.c.h.b16 %v133
    %v224 = vunpack.c.l.b16 %v134
    %v225 = vunpack.c.h.b16 %v134
    %v226 = vunpack.c.l.b16 %v135
    %v227 = vunpack.c.h.b16 %v135
    %v228 = vunpack.c.l.b16 %v136
    %v229 = vunpack.c.h.b16 %v136
    %v230 = vunpack.c.l.b16 %v137
    %v231 = vunpack.c.h.b16 %v137
    %v232 = vunpack.c.l.b16 %v138
    %v233 = vunpack.c.h.b16 %v138
    %v234 = vunpack.c.l.b16 %v139
    %v235 = vunpack.c.h.b16 %v139
    %v236 = vunpack.c.l.b16 %v140
    %v237 = vunpack.c.h.b16 %v140
    %v238 = vunpack.c.l.b16 %v141
    %v239 = vunpack.c.h.b16 %v141
    %v240 = vunpack.c.l.b16 %v142
    %v241 = vunpack.c.h.b16 %v142
    %v242 = vunpack.c.l.b16 %v143
    %v243 = vunpack.c.h.b16 %v143
    %v244 = vunpack.c.l.b16 %v144
    %v245 = vunpack.c.h.b16 %v144
    %v246 = vunpack.c.l.b16 %v145
    %v247 = vunpack.c.h.b16 %v145
    %v248 = vunpack.c.l.b16 %v146
    %v249 = vunpack.c.h.b16 %v146
    %v250 = vunpack.c.l.b16 %v147
    %v251 = vunpack.c.h.b16 %v147
    %v252 = vunpack.c.l.b16 %v148
    %v253 = vunpack.c.h.b16 %v148
    %v254 = vunpack.c.l.b16 %v149
    %v255 = vunpack.c.h.b16 %v149
    %v256 = vunpack.c.l.b16 %v150
    %v257 = vunpack.c.h.b16 %v150
    %v258 = vunpack.c.l.b16 %v151
    %v259 = vunpack.c.h.b16 %v151
    %v260 = vpack.c.b16 %v198, %v196
    %v261 = vpack.c.b16 %v199, %v197
    %v262 = vpack.c.b16 %v202, %v200
    %v263 = vpack.c.b16 %v203, %v201
    %v264 = vpack.c.b16 %v206, %v204
    %v265 = vpack.c.b16 %v207, %v205
    %v266 = vpack.c.b16 %v210, %v208
    %v267 = vpack.c.b16 %v211, %v209
    %v268 = vpack.c.b16 %v214, %v212
    %v269 = vpack.c.b16 %v215, %v213
    %v270 = vpack.c.b16 %v218, %v216
    %v271 = vpack.c.b16 %v219, %v217
    %v272 = vpack.c.b16 %v222, %v220
    %v273 = vpack.c.b16 %v223, %v221
    %v274 = vpack.c.b16 %v226, %v224
    %v275 = vpack.c.b16 %v227, %v225
    %v276 = vpack.c.b16 %v230, %v228
    %v277 = vpack.c.b16 %v231, %v229
    %v278 = vpack.c.b16 %v234, %v232
    %v279 = vpack.c.b16 %v235, %v233
    %v280 = vpack.c.b16 %v238, %v236
    %v281 = vpack.c.b16 %v239, %v237
    %v282 = vpack.c.b16 %v242, %v240
    %v283 = vpack.c.b16 %v243, %v241
    %v284 = vpack.c.b16 %v246, %v244
    %v285 = vpack.c.b16 %v247, %v245
    %v286 = vpack.c.b16 %v250, %v248
    %v287 = vpack.c.b16 %v251, %v249
    %v288 = vpack.c.b16 %v254, %v252
    %v289 = vpack.c.b16 %v255, %v253
    %v290 = vpack.c.b16 %v258, %v256
    %v291 = vpack.c.b16 %v259, %v257
    %324 = vmatprep.subr.bf16.mxu0 %v261
    %325 = vmatpush1.bf16.msra.mxu0 %v260
    %326 = vmatprep.subr.bf16.mxu0 %v263
    %327 = vmatpush1.bf16.msra.mxu0 %v262
    %328 = vmatprep.subr.bf16.mxu0 %v265
    %329 = vmatpush1.bf16.msra.mxu0 %v264
    %330 = vmatprep.subr.bf16.mxu0 %v267
    %331 = vmatpush1.bf16.msra.mxu0 %v266
    %332 = vmatprep.subr.bf16.mxu0 %v269
    %333 = vmatpush1.bf16.msra.mxu0 %v268
    %334 = vmatprep.subr.bf16.mxu0 %v271
    %335 = vmatpush1.bf16.msra.mxu0 %v270
    %336 = vmatprep.subr.bf16.mxu0 %v273
    %337 = vmatpush1.bf16.msra.mxu0 %v272
    %338 = vmatprep.subr.bf16.mxu0 %v275
    %339 = vmatpush1.bf16.msra.mxu0 %v274
    %340 = vmatprep.subr.bf16.mxu0 %v277
    %341 = vmatpush1.bf16.msra.mxu0 %v276
    %342 = vmatprep.subr.bf16.mxu0 %v279
    %343 = vmatpush1.bf16.msra.mxu0 %v278
    %344 = vmatprep.subr.bf16.mxu0 %v281
    %345 = vmatpush1.bf16.msra.mxu0 %v280
    %346 = vmatprep.subr.bf16.mxu0 %v283
    %347 = vmatpush1.bf16.msra.mxu0 %v282
    %348 = vmatprep.subr.bf16.mxu0 %v285
    %349 = vmatpush1.bf16.msra.mxu0 %v284
    %350 = vmatprep.subr.bf16.mxu0 %v287
    %351 = vmatpush1.bf16.msra.mxu0 %v286
    %352 = vmatprep.subr.bf16.mxu0 %v289
    %353 = vmatpush1.bf16.msra.mxu0 %v288
    %354 = vmatprep.subr.bf16.mxu0 %v291
    %355 = vmatpush1.bf16.msra.mxu0 %v290
    %356 = vmatprep.mubr.bf16.mxu0 %v119
    %357 = vmatmul.mubr.bf16.gmra.mrb[0].mxu0 %v118
    %v358 = vpop.f32.mrb[0].mxu0
    %v359 = vadd.f32 %v157, %v358
    %v360 = vpop.f32.mrb[0].mxu0
    %v361 = vadd.f32 %v161, %v360
    %v362 = vpop.f32.mrb[0].mxu0
    %v363 = vpop.f32.mrb[0].mxu0
    %364 = vdwg.mxu0
    %v365 = vmax.f32 %v359, 0.0
    %v366 = vmax.f32 %v361, 0.0
    %v367 = vpack.c.bf16 %v365, %v365
    %v368 = vpack.c.bf16 %v366, %v366
    %v369 = vld [vmem:[%s4] sm:$0xf]
    %v370 = vld [vmem:[%s4 + $0x4] sm:$0xf]
    %v371 = vld [vmem:[%s4 + $0x8] sm:$0xf]
    %v372 = vld [vmem:[%s4 + $0xc] sm:$0xf]
    %v373 = vld [vmem:[%s4 + $0x10] sm:$0xf]
    %v374 = vld [vmem:[%s4 + $0x14] sm:$0xf]
    %v375 = vld [vmem:[%s4 + $0x18] sm:$0xf]
    %v376 = vld [vmem:[%s4 + $0x1c] sm:$0xf]
    %v377 = vld [vmem:[%s4 + $0x20] sm:$0xf]
    %v378 = vld [vmem:[%s4 + $0x24] sm:$0xf]
    %v379 = vld [vmem:[%s4 + $0x28] sm:$0xf]
    %v380 = vld [vmem:[%s4 + $0x2c] sm:$0xf]
    %v381 = vld [vmem:[%s4 + $0x30] sm:$0xf]
    %v382 = vld [vmem:[%s4 + $0x34] sm:$0xf]
    %v383 = vld [vmem:[%s4 + $0x38] sm:$0xf]
    %v384 = vld [vmem:[%s4 + $0x3c] sm:$0xf]
    %v385 = vld [vmem:[%s4 + $0x40] sm:$0xf]
    %v386 = vld [vmem:[%s4 + $0x44] sm:$0xf]
    %v387 = vld [vmem:[%s4 + $0x48] sm:$0xf]
    %v388 = vld [vmem:[%s4 + $0x4c] sm:$0xf]
    %v389 = vld [vmem:[%s4 + $0x50] sm:$0xf]
    %v390 = vld [vmem:[%s4 + $0x54] sm:$0xf]
    %v391 = vld [vmem:[%s4 + $0x58] sm:$0xf]
    %v392 = vld [vmem:[%s4 + $0x5c] sm:$0xf]
    %v393 = vld [vmem:[%s4 + $0x60] sm:$0xf]
    %v394 = vld [vmem:[%s4 + $0x64] sm:$0xf]
    %v395 = vld [vmem:[%s4 + $0x68] sm:$0xf]
    %v396 = vld [vmem:[%s4 + $0x6c] sm:$0xf]
    %v397 = vld [vmem:[%s4 + $0x70] sm:$0xf]
    %v398 = vld [vmem:[%s4 + $0x74] sm:$0xf]
    %v399 = vld [vmem:[%s4 + $0x78] sm:$0xf]
    %v400 = vld [vmem:[%s4 + $0x7c] sm:$0xf]
    %v401 = vld [vmem:[%s1 + $0x4] sm:$0x1]
    %v403 = vlaneseq
    %v404 = vshrl.u32 %v403, 7
    %v405 = vsub.s32 0, %v404
    %v406 = vrot.slane %v401, %v405
    %v440 = vunpack.c.l.b16 %v369
    %v441 = vunpack.c.l.b16 %v370
    %v442 = vunpack.c.l.b16 %v371
    %v443 = vunpack.c.l.b16 %v372
    %v444 = vunpack.c.l.b16 %v373
    %v445 = vunpack.c.l.b16 %v374
    %v446 = vunpack.c.l.b16 %v375
    %v447 = vunpack.c.l.b16 %v376
    %v448 = vunpack.c.l.b16 %v377
    %v449 = vunpack.c.l.b16 %v378
    %v450 = vunpack.c.l.b16 %v379
    %v451 = vunpack.c.l.b16 %v380
    %v452 = vunpack.c.l.b16 %v381
    %v453 = vunpack.c.l.b16 %v382
    %v454 = vunpack.c.l.b16 %v383
    %v455 = vunpack.c.l.b16 %v384
    %v456 = vunpack.c.l.b16 %v385
    %v457 = vunpack.c.l.b16 %v386
    %v458 = vunpack.c.l.b16 %v387
    %v459 = vunpack.c.l.b16 %v388
    %v460 = vunpack.c.l.b16 %v389
    %v461 = vunpack.c.l.b16 %v390
    %v462 = vunpack.c.l.b16 %v391
    %v463 = vunpack.c.l.b16 %v392
    %v464 = vunpack.c.l.b16 %v393
    %v465 = vunpack.c.l.b16 %v394
    %v466 = vunpack.c.l.b16 %v395
    %v467 = vunpack.c.l.b16 %v396
    %v468 = vunpack.c.l.b16 %v397
    %v469 = vunpack.c.l.b16 %v398
    %v470 = vunpack.c.l.b16 %v399
    %v471 = vunpack.c.l.b16 %v400
    %v472 = vpack.c.b16 %v441, %v440
    %v473 = vpack.c.b16 %v443, %v442
    %v474 = vpack.c.b16 %v445, %v444
    %v475 = vpack.c.b16 %v447, %v446
    %v476 = vpack.c.b16 %v449, %v448
    %v477 = vpack.c.b16 %v451, %v450
    %v478 = vpack.c.b16 %v453, %v452
    %v479 = vpack.c.b16 %v455, %v454
    %v480 = vpack.c.b16 %v457, %v456
    %v481 = vpack.c.b16 %v459, %v458
    %v482 = vpack.c.b16 %v461, %v460
    %v483 = vpack.c.b16 %v463, %v462
    %v484 = vpack.c.b16 %v465, %v464
    %v485 = vpack.c.b16 %v467, %v466
    %v486 = vpack.c.b16 %v469, %v468
    %v487 = vpack.c.b16 %v471, %v470
    %504 = vmatprep.subr.bf16.mxu0 0
    %505 = vmatpush1.bf16.msra.mxu0 %v472
    %506 = vmatprep.subr.bf16.mxu0 0
    %507 = vmatpush1.bf16.msra.mxu0 %v473
    %508 = vmatprep.subr.bf16.mxu0 0
    %509 = vmatpush1.bf16.msra.mxu0 %v474
    %510 = vmatprep.subr.bf16.mxu0 0
    %511 = vmatpush1.bf16.msra.mxu0 %v475
    %512 = vmatprep.subr.bf16.mxu0 0
    %513 = vmatpush1.bf16.msra.mxu0 %v476
    %514 = vmatprep.subr.bf16.mxu0 0
    %515 = vmatpush1.bf16.msra.mxu0 %v477
    %516 = vmatprep.subr.bf16.mxu0 0
    %517 = vmatpush1.bf16.msra.mxu0 %v478
    %518 = vmatprep.subr.bf16.mxu0 0
    %519 = vmatpush1.bf16.msra.mxu0 %v479
    %520 = vmatprep.subr.bf16.mxu0 0
    %521 = vmatpush1.bf16.msra.mxu0 %v480
    %522 = vmatprep.subr.bf16.mxu0 0
    %523 = vmatpush1.bf16.msra.mxu0 %v481
    %524 = vmatprep.subr.bf16.mxu0 0
    %525 = vmatpush1.bf16.msra.mxu0 %v482
    %526 = vmatprep.subr.bf16.mxu0 0
    %527 = vmatpush1.bf16.msra.mxu0 %v483
    %528 = vmatprep.subr.bf16.mxu0 0
    %529 = vmatpush1.bf16.msra.mxu0 %v484
    %530 = vmatprep.subr.bf16.mxu0 0
    %531 = vmatpush1.bf16.msra.mxu0 %v485
    %532 = vmatprep.subr.bf16.mxu0 0
    %533 = vmatpush1.bf16.msra.mxu0 %v486
    %534 = vmatprep.subr.bf16.mxu0 0
    %535 = vmatpush1.bf16.msra.mxu0 %v487
    %536 = vmatprep.mubr.bf16.mxu0 %v368
    %537 = vmatmul.mubr.bf16.gmra.mrb[0].mxu0 %v367
    %v538 = vpop.f32.mrb[0].mxu0
    %v539 = vadd.f32 %v406, %v538
    %v540 = vpop.f32.mrb[0].mxu0
    %v541 = vpop.f32.mrb[0].mxu0
    %v542 = vpop.f32.mrb[0].mxu0
    %543 = vdwg.mxu0
    %v544 = vmax.f32 %v539, 0.0
    %v545 = vpack.c.bf16 %v544, %v544
    %v546 = vld [vmem:[%s5] sm:$0xff]
    %v547 = vld [vmem:[%s5 + $0x8] sm:$0xff]
    %v548 = vld [vmem:[%s5 + $0x10] sm:$0xff]
    %v549 = vld [vmem:[%s5 + $0x18] sm:$0xff]
    %v550 = vld [vmem:[%s5 + $0x20] sm:$0xff]
    %v551 = vld [vmem:[%s5 + $0x28] sm:$0xff]
    %v552 = vld [vmem:[%s5 + $0x30] sm:$0xff]
    %v553 = vld [vmem:[%s5 + $0x38] sm:$0xff]
    %v554 = vld [vmem:[%s5 + $0x40] sm:$0xff]
    %v555 = vld [vmem:[%s5 + $0x48] sm:$0xff]
    %v556 = vld [vmem:[%s5 + $0x50] sm:$0xff]
    %v557 = vld [vmem:[%s5 + $0x58] sm:$0xff]
    %v558 = vld [vmem:[%s5 + $0x60] sm:$0xff]
    %v559 = vld [vmem:[%s5 + $0x68] sm:$0xff]
    %v560 = vld [vmem:[%s5 + $0x70] sm:$0xff]
    %v561 = vld [vmem:[%s5 + $0x78] sm:$0xff]
    %v562 = vld [vmem:[%s1 + $0x5] sm:$0x3]
    %v564 = vlaneseq
    %v565 = vshrl.u32 %v564, 7
    %v566 = vsub.s32 0, %v565
    %v567 = vrot.slane %v562, %v566
    %v568 = vlaneseq
    %v569 = vshrl.u32 %v568, 7
    %v570 = vsub.s32 1, %v569
    %v571 = vrot.slane %v562, %v570
    %v590 = vunpack.c.l.b16 %v546
    %v591 = vunpack.c.h.b16 %v546
    %v592 = vunpack.c.l.b16 %v547
    %v593 = vunpack.c.h.b16 %v547
    %v594 = vunpack.c.l.b16 %v548
    %v595 = vunpack.c.h.b16 %v548
    %v596 = vunpack.c.l.b16 %v549
    %v597 = vunpack.c.h.b16 %v549
    %v598 = vunpack.c.l.b16 %v550
    %v599 = vunpack.c.h.b16 %v550
    %v600 = vunpack.c.l.b16 %v551
    %v601 = vunpack.c.h.b16 %v551
    %v602 = vunpack.c.l.b16 %v552
    %v603 = vunpack.c.h.b16 %v552
    %v604 = vunpack.c.l.b16 %v553
    %v605 = vunpack.c.h.b16 %v553
    %v606 = vunpack.c.l.b16 %v554
    %v607 = vunpack.c.h.b16 %v554
    %v608 = vunpack.c.l.b16 %v555
    %v609 = vunpack.c.h.b16 %v555
    %v610 = vunpack.c.l.b16 %v556
    %v611 = vunpack.c.h.b16 %v556
    %v612 = vunpack.c.l.b16 %v557
    %v613 = vunpack.c.h.b16 %v557
    %v614 = vunpack.c.l.b16 %v558
    %v615 = vunpack.c.h.b16 %v558
    %v616 = vunpack.c.l.b16 %v559
    %v617 = vunpack.c.h.b16 %v559
    %v618 = vunpack.c.l.b16 %v560
    %v619 = vunpack.c.h.b16 %v560
    %v620 = vunpack.c.l.b16 %v561
    %v621 = vunpack.c.h.b16 %v561
    %v622 = vpack.c.b16 %v592, %v590
    %v623 = vpack.c.b16 %v593, %v591
    %v624 = vpack.c.b16 %v596, %v594
    %v625 = vpack.c.b16 %v597, %v595
    %v626 = vpack.c.b16 %v600, %v598
    %v627 = vpack.c.b16 %v601, %v599
    %v628 = vpack.c.b16 %v604, %v602
    %v629 = vpack.c.b16 %v605, %v603
    %v630 = vpack.c.b16 %v608, %v606
    %v631 = vpack.c.b16 %v609, %v607
    %v632 = vpack.c.b16 %v612, %v610
    %v633 = vpack.c.b16 %v613, %v611
    %v634 = vpack.c.b16 %v616, %v614
    %v635 = vpack.c.b16 %v617, %v615
    %v636 = vpack.c.b16 %v620, %v618
    %v637 = vpack.c.b16 %v621, %v619
    %654 = vmatprep.subr.bf16.mxu0 %v623
    %655 = vmatpush1.bf16.msra.mxu0 %v622
    %656 = vmatprep.subr.bf16.mxu0 %v625
    %657 = vmatpush1.bf16.msra.mxu0 %v624
    %658 = vmatprep.subr.bf16.mxu0 %v627
    %659 = vmatpush1.bf16.msra.mxu0 %v626
    %660 = vmatprep.subr.bf16.mxu0 %v629
    %661 = vmatpush1.bf16.msra.mxu0 %v628
    %662 = vmatprep.subr.bf16.mxu0 %v631
    %663 = vmatpush1.bf16.msra.mxu0 %v630
    %664 = vmatprep.subr.bf16.mxu0 %v633
    %665 = vmatpush1.bf16.msra.mxu0 %v632
    %666 = vmatprep.subr.bf16.mxu0 %v635
    %667 = vmatpush1.bf16.msra.mxu0 %v634
    %668 = vmatprep.subr.bf16.mxu0 %v637
    %669 = vmatpush1.bf16.msra.mxu0 %v636
    %670 = vmatprep.subr.bf16.mxu0 0
    %671 = vmatpush1.bf16.msra.mxu0 0
    %672 = vmatprep.subr.bf16.mxu0 0
    %673 = vmatpush1.bf16.msra.mxu0 0
    %674 = vmatprep.subr.bf16.mxu0 0
    %675 = vmatpush1.bf16.msra.mxu0 0
    %676 = vmatprep.subr.bf16.mxu0 0
    %677 = vmatpush1.bf16.msra.mxu0 0
    %678 = vmatprep.subr.bf16.mxu0 0
    %679 = vmatpush1.bf16.msra.mxu0 0
    %680 = vmatprep.subr.bf16.mxu0 0
    %681 = vmatpush1.bf16.msra.mxu0 0
    %682 = vmatprep.subr.bf16.mxu0 0
    %683 = vmatpush1.bf16.msra.mxu0 0
    %684 = vmatprep.subr.bf16.mxu0 0
    %685 = vmatpush1.bf16.msra.mxu0 0
    %686 = vmatprep.mubr.bf16.mxu0 0
    %687 = vmatmul.mubr.bf16.gmra.mrb[0].mxu0 %v545
    %v688 = vpop.f32.mrb[0].mxu0
    %v689 = vadd.f32 %v567, %v688
    %v690 = vpop.f32.mrb[0].mxu0
    %v691 = vadd.f32 %v571, %v690
    %v692 = vpop.f32.mrb[0].mxu0
    %v693 = vpop.f32.mrb[0].mxu0
    %694 = vdwg.mxu0
    %v695 = vmax.f32 %v689, 0.0
    %v696 = vmax.f32 %v691, 0.0
    %v697 = vpack.c.bf16 %v695, %v695
    %v698 = vpack.c.bf16 %v696, %v696
    %v699 = vld [vmem:[%s6] sm:$0xff]
    %v700 = vld [vmem:[%s6 + $0x8] sm:$0xff]
    %v701 = vld [vmem:[%s6 + $0x10] sm:$0xff]
    %v702 = vld [vmem:[%s6 + $0x18] sm:$0xff]
    %v703 = vld [vmem:[%s6 + $0x20] sm:$0xff]
    %v704 = vld [vmem:[%s6 + $0x28] sm:$0xff]
    %v705 = vld [vmem:[%s6 + $0x30] sm:$0xff]
    %v706 = vld [vmem:[%s6 + $0x38] sm:$0xff]
    %v707 = vld [vmem:[%s6 + $0x40] sm:$0xff]
    %v708 = vld [vmem:[%s6 + $0x48] sm:$0xff]
    %v709 = vld [vmem:[%s6 + $0x50] sm:$0xff]
    %v710 = vld [vmem:[%s6 + $0x58] sm:$0xff]
    %v711 = vld [vmem:[%s6 + $0x60] sm:$0xff]
    %v712 = vld [vmem:[%s6 + $0x68] sm:$0xff]
    %v713 = vld [vmem:[%s6 + $0x70] sm:$0xff]
    %v714 = vld [vmem:[%s6 + $0x78] sm:$0xff]
    %v715 = vld [vmem:[%s6 + $0x80] sm:$0xff]
    %v716 = vld [vmem:[%s6 + $0x88] sm:$0xff]
    %v717 = vld [vmem:[%s6 + $0x90] sm:$0xff]
    %v718 = vld [vmem:[%s6 + $0x98] sm:$0xff]
    %v719 = vld [vmem:[%s6 + $0xa0] sm:$0xff]
    %v720 = vld [vmem:[%s6 + $0xa8] sm:$0xff]
    %v721 = vld [vmem:[%s6 + $0xb0] sm:$0xff]
    %v722 = vld [vmem:[%s6 + $0xb8] sm:$0xff]
    %v723 = vld [vmem:[%s1 + $0x7] sm:$0x3]
    %v725 = vlaneseq
    %v726 = vshrl.u32 %v725, 7
    %v727 = vsub.s32 0, %v726
    %v728 = vrot.slane %v723, %v727
    %v729 = vlaneseq
    %v730 = vshrl.u32 %v729, 7
    %v731 = vsub.s32 1, %v730
    %v732 = vrot.slane %v723, %v731
    %v759 = vunpack.c.l.b16 %v699
    %v760 = vunpack.c.h.b16 %v699
    %v761 = vunpack.c.l.b16 %v700
    %v762 = vunpack.c.h.b16 %v700
    %v763 = vunpack.c.l.b16 %v701
    %v764 = vunpack.c.h.b16 %v701
    %v765 = vunpack.c.l.b16 %v702
    %v766 = vunpack.c.h.b16 %v702
    %v767 = vunpack.c.l.b16 %v703
    %v768 = vunpack.c.h.b16 %v703
    %v769 = vunpack.c.l.b16 %v704
    %v770 = vunpack.c.h.b16 %v704
    %v771 = vunpack.c.l.b16 %v705
    %v772 = vunpack.c.h.b16 %v705
    %v773 = vunpack.c.l.b16 %v706
    %v774 = vunpack.c.h.b16 %v706
    %v775 = vunpack.c.l.b16 %v707
    %v776 = vunpack.c.h.b16 %v707
    %v777 = vunpack.c.l.b16 %v708
    %v778 = vunpack.c.h.b16 %v708
    %v779 = vunpack.c.l.b16 %v709
    %v780 = vunpack.c.h.b16 %v709
    %v781 = vunpack.c.l.b16 %v710
    %v782 = vunpack.c.h.b16 %v710
    %v783 = vunpack.c.l.b16 %v711
    %v784 = vunpack.c.h.b16 %v711
    %v785 = vunpack.c.l.b16 %v712
    %v786 = vunpack.c.h.b16 %v712
    %v787 = vunpack.c.l.b16 %v713
    %v788 = vunpack.c.h.b16 %v713
    %v789 = vunpack.c.l.b16 %v714
    %v790 = vunpack.c.h.b16 %v714
    %v791 = vunpack.c.l.b16 %v715
    %v792 = vunpack.c.h.b16 %v715
    %v793 = vunpack.c.l.b16 %v716
    %v794 = vunpack.c.h.b16 %v716
    %v795 = vunpack.c.l.b16 %v717
    %v796 = vunpack.c.h.b16 %v717
    %v797 = vunpack.c.l.b16 %v718
    %v798 = vunpack.c.h.b16 %v718
    %v799 = vunpack.c.l.b16 %v719
    %v800 = vunpack.c.h.b16 %v719
    %v801 = vunpack.c.l.b16 %v720
    %v802 = vunpack.c.h.b16 %v720
    %v803 = vunpack.c.l.b16 %v721
    %v804 = vunpack.c.h.b16 %v721
    %v805 = vunpack.c.l.b16 %v722
    %v806 = vunpack.c.h.b16 %v722
    %v807 = vpack.c.b16 %v761, %v759
    %v808 = vpack.c.b16 %v762, %v760
    %v809 = vpack.c.b16 %v765, %v763
    %v810 = vpack.c.b16 %v766, %v764
    %v811 = vpack.c.b16 %v769, %v767
    %v812 = vpack.c.b16 %v770, %v768
    %v813 = vpack.c.b16 %v773, %v771
    %v814 = vpack.c.b16 %v774, %v772
    %v815 = vpack.c.b16 %v777, %v775
    %v816 = vpack.c.b16 %v778, %v776
    %v817 = vpack.c.b16 %v781, %v779
    %v818 = vpack.c.b16 %v782, %v780
    %v819 = vpack.c.b16 %v785, %v783
    %v820 = vpack.c.b16 %v786, %v784
    %v821 = vpack.c.b16 %v789, %v787
    %v822 = vpack.c.b16 %v790, %v788
    %v823 = vpack.c.b16 %v793, %v791
    %v824 = vpack.c.b16 %v794, %v792
    %v825 = vpack.c.b16 %v797, %v795
    %v826 = vpack.c.b16 %v798, %v796
    %v827 = vpack.c.b16 %v801, %v799
    %v828 = vpack.c.b16 %v802, %v800
    %v829 = vpack.c.b16 %v805, %v803
    %v830 = vpack.c.b16 %v806, %v804
    %vm855 = vcmask 523264
    %v857 = vsel %vm855, %v698, 0
    %859 = vmatprep.subr.bf16.mxu0 %v808
    %860 = vmatpush1.bf16.msra.mxu0 %v807
    %861 = vmatprep.subr.bf16.mxu0 %v810
    %862 = vmatpush1.bf16.msra.mxu0 %v809
    %863 = vmatprep.subr.bf16.mxu0 %v812
    %864 = vmatpush1.bf16.msra.mxu0 %v811
    %865 = vmatprep.subr.bf16.mxu0 %v814
    %866 = vmatpush1.bf16.msra.mxu0 %v813
    %867 = vmatprep.subr.bf16.mxu0 %v816
    %868 = vmatpush1.bf16.msra.mxu0 %v815
    %869 = vmatprep.subr.bf16.mxu0 %v818
    %870 = vmatpush1.bf16.msra.mxu0 %v817
    %871 = vmatprep.subr.bf16.mxu0 %v820
    %872 = vmatpush1.bf16.msra.mxu0 %v819
    %873 = vmatprep.subr.bf16.mxu0 %v822
    %874 = vmatpush1.bf16.msra.mxu0 %v821
    %875 = vmatprep.subr.bf16.mxu0 %v824
    %876 = vmatpush1.bf16.msra.mxu0 %v823
    %877 = vmatprep.subr.bf16.mxu0 %v826
    %878 = vmatpush1.bf16.msra.mxu0 %v825
    %879 = vmatprep.subr.bf16.mxu0 %v828
    %880 = vmatpush1.bf16.msra.mxu0 %v827
    %881 = vmatprep.subr.bf16.mxu0 %v830
    %882 = vmatpush1.bf16.msra.mxu0 %v829
    %883 = vmatprep.subr.bf16.mxu0 0
    %884 = vmatpush1.bf16.msra.mxu0 0
    %885 = vmatprep.subr.bf16.mxu0 0
    %886 = vmatpush1.bf16.msra.mxu0 0
    %887 = vmatprep.subr.bf16.mxu0 0
    %888 = vmatpush1.bf16.msra.mxu0 0
    %889 = vmatprep.subr.bf16.mxu0 0
    %890 = vmatpush1.bf16.msra.mxu0 0
    %891 = vmatprep.mubr.bf16.mxu0 %v857
    %892 = vmatmul.mubr.bf16.gmra.mrb[0].mxu0 %v697
    %v893 = vpop.f32.mrb[0].mxu0
    %v894 = vadd.f32 %v728, %v893
    %v895 = vpop.f32.mrb[0].mxu0
    %v896 = vadd.f32 %v732, %v895
    %v897 = vpop.f32.mrb[0].mxu0
    %v898 = vpop.f32.mrb[0].mxu0
    %899 = vdwg.mxu0
    %v900 = vmax.f32 %v894, 0.0
    %v901 = vmax.f32 %v896, 0.0
    %v902 = vpack.c.bf16 %v900, %v900
    %v903 = vpack.c.bf16 %v901, %v901
    %v904 = vld [vmem:[#allocation2] sm:$0xf]
    %v905 = vld [vmem:[#allocation2 + $0x4] sm:$0xf]
    %v906 = vld [vmem:[#allocation2 + $0x8] sm:$0xf]
    %v907 = vld [vmem:[#allocation2 + $0xc] sm:$0xf]
    %v908 = vld [vmem:[#allocation2 + $0x10] sm:$0xf]
    %v909 = vld [vmem:[#allocation2 + $0x14] sm:$0xf]
    %v910 = vld [vmem:[#allocation2 + $0x18] sm:$0xf]
    %v911 = vld [vmem:[#allocation2 + $0x1c] sm:$0xf]
    %v912 = vld [vmem:[#allocation2 + $0x20] sm:$0xf]
    %v913 = vld [vmem:[#allocation2 + $0x24] sm:$0xf]
    %v914 = vld [vmem:[#allocation2 + $0x28] sm:$0xf]
    %v915 = vld [vmem:[#allocation2 + $0x2c] sm:$0xf]
    %v916 = vld [vmem:[#allocation2 + $0x30] sm:$0xf]
    %v917 = vld [vmem:[#allocation2 + $0x34] sm:$0xf]
    %v918 = vld [vmem:[#allocation2 + $0x38] sm:$0xf]
    %v919 = vld [vmem:[#allocation2 + $0x3c] sm:$0xf]
    %v920 = vld [vmem:[#allocation2 + $0x40] sm:$0xf]
    %v921 = vld [vmem:[#allocation2 + $0x44] sm:$0xf]
    %v922 = vld [vmem:[#allocation2 + $0x48] sm:$0xf]
    %v923 = vld [vmem:[#allocation2 + $0x4c] sm:$0xf]
    %v924 = vld [vmem:[%s1 + $0x9] sm:$0x1]
    %v926 = vlaneseq
    %v927 = vshrl.u32 %v926, 7
    %v928 = vsub.s32 0, %v927
    %v929 = vrot.slane %v924, %v928
    %v951 = vunpack.c.l.b16 %v904
    %v952 = vunpack.c.l.b16 %v905
    %v953 = vunpack.c.l.b16 %v906
    %v954 = vunpack.c.l.b16 %v907
    %v955 = vunpack.c.l.b16 %v908
    %v956 = vunpack.c.l.b16 %v909
    %v957 = vunpack.c.l.b16 %v910
    %v958 = vunpack.c.l.b16 %v911
    %v959 = vunpack.c.l.b16 %v912
    %v960 = vunpack.c.l.b16 %v913
    %v961 = vunpack.c.l.b16 %v914
    %v962 = vunpack.c.l.b16 %v915
    %v963 = vunpack.c.l.b16 %v916
    %v964 = vunpack.c.l.b16 %v917
    %v965 = vunpack.c.l.b16 %v918
    %v966 = vunpack.c.l.b16 %v919
    %v967 = vunpack.c.l.b16 %v920
    %v968 = vunpack.c.l.b16 %v921
    %v969 = vunpack.c.l.b16 %v922
    %v970 = vunpack.c.l.b16 %v923
    %v971 = vpack.c.b16 %v952, %v951
    %v972 = vpack.c.b16 %v954, %v953
    %v973 = vpack.c.b16 %v956, %v955
    %v974 = vpack.c.b16 %v958, %v957
    %v975 = vpack.c.b16 %v960, %v959
    %v976 = vpack.c.b16 %v962, %v961
    %v977 = vpack.c.b16 %v964, %v963
    %v978 = vpack.c.b16 %v966, %v965
    %v979 = vpack.c.b16 %v968, %v967
    %v980 = vpack.c.b16 %v970, %v969
    %vm991 = vcmask 261120
    %v993 = vsel %vm991, %v903, 0
    %995 = vmatprep.subr.bf16.mxu0 0
    %996 = vmatpush1.bf16.msra.mxu0 %v971
    %997 = vmatprep.subr.bf16.mxu0 0
    %998 = vmatpush1.bf16.msra.mxu0 %v972
    %999 = vmatprep.subr.bf16.mxu0 0
    %1000 = vmatpush1.bf16.msra.mxu0 %v973
    %1001 = vmatprep.subr.bf16.mxu0 0
    %1002 = vmatpush1.bf16.msra.mxu0 %v974
    %1003 = vmatprep.subr.bf16.mxu0 0
    %1004 = vmatpush1.bf16.msra.mxu0 %v975
    %1005 = vmatprep.subr.bf16.mxu0 0
    %1006 = vmatpush1.bf16.msra.mxu0 %v976
    %1007 = vmatprep.subr.bf16.mxu0 0
    %1008 = vmatpush1.bf16.msra.mxu0 %v977
    %1009 = vmatprep.subr.bf16.mxu0 0
    %1010 = vmatpush1.bf16.msra.mxu0 %v978
    %1011 = vmatprep.subr.bf16.mxu0 0
    %1012 = vmatpush1.bf16.msra.mxu0 %v979
    %1013 = vmatprep.subr.bf16.mxu0 0
    %1014 = vmatpush1.bf16.msra.mxu0 %v980
    %1015 = vmatprep.subr.bf16.mxu0 0
    %1016 = vmatpush1.bf16.msra.mxu0 0
    %1017 = vmatprep.subr.bf16.mxu0 0
    %1018 = vmatpush1.bf16.msra.mxu0 0
    %1019 = vmatprep.subr.bf16.mxu0 0
    %1020 = vmatpush1.bf16.msra.mxu0 0
    %1021 = vmatprep.subr.bf16.mxu0 0
    %1022 = vmatpush1.bf16.msra.mxu0 0
    %1023 = vmatprep.subr.bf16.mxu0 0
    %1024 = vmatpush1.bf16.msra.mxu0 0
    %1025 = vmatprep.subr.bf16.mxu0 0
    %1026 = vmatpush1.bf16.msra.mxu0 0
    %1027 = vmatprep.mubr.bf16.mxu0 %v993
    %1028 = vmatmul.mubr.bf16.gmra.mrb[0].mxu0 %v902
    %v1029 = vpop.f32.mrb[0].mxu0
    %v1030 = vadd.f32 %v929, %v1029
    %v1031 = vpop.f32.mrb[0].mxu0
    %v1032 = vpop.f32.mrb[0].mxu0
    %v1033 = vpop.f32.mrb[0].mxu0
    %1034 = vdwg.mxu0
    %v1035 = vlaneseq
    %v1036 = vand.u32 %v1035, 127
    %vm1037 = vcmp.ge.s32.totalorder %v1036, 0
    %vm1038 = vcmp.lt.s32.totalorder %v1036, 6
    %vm1039 = vmand %vm1037, %vm1038
    %v1040 = vsel %vm1039, %v1030, -inf
    %vm1041 = vcmask 1043456
    %v1042 = vsel %vm1041, %v1040, -inf
    %1043 = vmax.xlane.f32.xlu0 %v1042
    %v1044 = vpop.xlane.xlu0 %1043
    %v1045 = vsub.f32 %v1040, %v1044
    %v1046 = vmul.f32 %v1045, 1.442695
    %v1047 = vpow.pop %v1046
    %v1048 = vsel %vm1041, %v1047, 0.0
    %1049 = vadd.xlane.f32.xlu0 %v1048
    %v1050 = vpop.xlane.xlu0 %1049
    %v1051 = vrcp.pop %v1050
    %v1052 = vmul.f32 %v1047, %v1051
    %v1053 = vlog2.pop %v1050
    %v1054 = vmul.f32 %v1053, 0.6931472
    %v1055 = vsub.f32 0.0, %v1054
    %v1056 = vsub.f32 %v1045, %v1054
    %vm1057 = vcmp.gt.f32.partialorder %v1052, 0.0
    %v1058 = vmul.f32 %v1052, %v1056
    %v1059 = vsel %vm1057, %v1058, 0.0
    %v1060 = vsel %vm1041, %v1059, 0.0
    %1061 = vadd.xlane.f32.xlu0 %v1060
    %v1062 = vpop.xlane.xlu0 %1061
    %v1063 = vsub.f32 0.0, %v1062
    %vm1064 = vcmp.eq.f32.partialorder %v1040, %v1044
    %vm1065 = vmand %vm1039, %vm1064
    %v1066 = vsel %vm1065, %v1036, 128
    %v1067 = vsel %vm1041, %v1066, 2147483647
    %v1068 = vand.u32 %v1067, 65535
    %v1069 = vshra.s32 %v1067, 16
    %v1070 = vcvt.s32.f32 %v1068
    %v1071 = vcvt.s32.f32 %v1069
    %1072 = vmin.xlane.f32.xlu0 %v1071
    %v1073 = vpop.xlane.xlu0 %1072
    %vm1074 = vcmp.eq.f32.partialorder %v1071, %v1073
    %v1075 = vsel %vm1074, %v1070, inf
    %1076 = vmin.xlane.f32.xlu0 %v1075
    %v1077 = vpop.xlane.xlu0 %1076
    %v1078 = vcvt.f32.s32 %v1077
    %v1079 = vcvt.f32.s32 %v1073
    %v1080 = vshll.u32 %v1079, 16
    %v1081 = vadd.s32 %v1080, %v1078
    %vm1082 = vcmp.ge.s32.totalorder %v1036, 64
    %vm1083 = vcmp.lt.s32.totalorder %v1036, 68
    %vm1084 = vmand %vm1082, %vm1083
    %v1085 = vsel %vm1084, %v1030, -inf
    %v1086 = vsel %vm1041, %v1085, -inf
    %1087 = vmax.xlane.f32.xlu0 %v1086
    %v1088 = vpop.xlane.xlu0 %1087
    %v1089 = vsub.f32 %v1085, %v1088
    %v1090 = vmul.f32 %v1089, 1.442695
    %v1091 = vpow.pop %v1090
    %v1092 = vsel %vm1041, %v1091, 0.0
    %1093 = vadd.xlane.f32.xlu0 %v1092
    %v1094 = vpop.xlane.xlu0 %1093
    %v1095 = vrcp.pop %v1094
    %v1096 = vmul.f32 %v1091, %v1095
    %v1097 = vlog2.pop %v1094
    %v1098 = vmul.f32 %v1097, 0.6931472
    %v1099 = vsub.f32 0.0, %v1098
    %v1100 = vsub.f32 %v1089, %v1098
    %vm1101 = vcmp.gt.f32.partialorder %v1096, 0.0
    %v1102 = vmul.f32 %v1096, %v1100
    %v1103 = vsel %vm1101, %v1102, 0.0
    %v1104 = vsel %vm1041, %v1103, 0.0
    %1105 = vadd.xlane.f32.xlu0 %v1104
    %v1106 = vpop.xlane.xlu0 %1105
    %v1107 = vsub.f32 0.0, %v1106
    %vm1108 = vcmp.eq.f32.partialorder %v1085, %v1088
    %vm1109 = vmand %vm1084, %vm1108
    %v1110 = vsub.s32 %v1036, 64
    %v1111 = vsel %vm1109, %v1110, 128
    %v1112 = vsel %vm1041, %v1111, 2147483647
    %v1113 = vand.u32 %v1112, 65535
    %v1114 = vshra.s32 %v1112, 16
    %v1115 = vcvt.s32.f32 %v1113
    %v1116 = vcvt.s32.f32 %v1114
    %1117 = vmin.xlane.f32.xlu0 %v1116
    %v1118 = vpop.xlane.xlu0 %1117
    %vm1119 = vcmp.eq.f32.partialorder %v1116, %v1118
    %v1120 = vsel %vm1119, %v1115, inf
    %1121 = vmin.xlane.f32.xlu0 %v1120
    %v1122 = vpop.xlane.xlu0 %1121
    %v1123 = vcvt.f32.s32 %v1122
    %v1124 = vcvt.f32.s32 %v1118
    %v1125 = vshll.u32 %v1124, 16
    %v1126 = vadd.s32 %v1125, %v1123
    %v1127 = vadd.f32 %v1052, %v1096
    %vm1128 = vcmp.eq.s32.totalorder %v1036, 96
    %v1129 = vcvt.s32.f32 %v1081
    %v1130 = vsel %vm1128, %v1129, %v1127
    %vm1131 = vcmp.eq.s32.totalorder %v1036, 97
    %v1132 = vcvt.s32.f32 %v1126
    %v1133 = vsel %vm1131, %v1132, %v1130
    %vm1134 = vcmp.eq.s32.totalorder %v1036, 98
    %v1135 = vadd.f32 %v1055, %v1099
    %v1136 = vsel %vm1134, %v1135, %v1133
    %vm1137 = vcmp.eq.s32.totalorder %v1036, 99
    %v1138 = vadd.f32 %v1063, %v1107
    %v1139 = vsel %vm1137, %v1138, %v1136
    %1140 = vst [vmem:[#allocation5] sm:$0xf] %v1139
    // Predicated region
    $region38: #{tpu_custom_call.1} parent=1 // pred_check
      _
    $region39: #{tpu_custom_call.1} parent=1 // pred_check_branch
      %1142 = sbr.rel (0) target = $region41
    $region40: #{tpu_custom_call.1} parent=1 // pred_region
      %s1144 = ssub.s32 64, 64
      %1145 = vsyncadd [#allocation4], %s1144
      %s1147 = sshll.u32 [#allocation5], 4
      %s1148 = int_to_ptr.vmem [resolvable:$true] %s1147
      %1150 = dma.vmem_to_hbm [thread:$0]  %s1148, 64, %s8, [#allocation4]
    $region41: #{tpu_custom_call.1} parent=1 // pred_fallthru
      _
    // Predicated region
    $region42: #{tpu_custom_call.1} parent=1 // pred_check
      _
    $region43: #{tpu_custom_call.1} parent=1 // pred_check_branch
      %1152 = sbr.rel (0) target = $region45
    $region44: #{tpu_custom_call.1} parent=1 // pred_region
      %1153 = dma.done [#allocation4], 64
    $region45: #{tpu_custom_call.1} parent=1 // pred_fallthru
      _
    %1154 = vsyncpa [#allocation3], 1
    %1155 = vsyncpa [#allocation4], 1

</llo_original>
